<compile_context>
chip_gen: v6e
topology: v6e:2x2x1
jax: 0.10.0
libtpu: 0.0.40
codegen_flags: <defaults>
</compile_context>

<pallas_src>
import jax
import jax.numpy as jnp
from jax.experimental import pallas as pl
from jax.experimental.pallas import tpu as pltpu


def _make_gru_cell_kernel(D_p, D_e):
    """Build the kernel with D_p/D_e baked in (static slice offsets)."""

    def kernel(s_ref, e0_ref, r_ref, w_ref, b_ref, out_ref, lhs_ref):
        s_t = s_ref[...].astype(jnp.float32)          # (B, D_p)
        e_0 = e0_ref[...].astype(jnp.float32)         # (B, D_e)
        r_t = r_ref[...].astype(jnp.float32)          # (B, D_e)

        re0 = r_t * e_0                               # r_t * e_0, reused twice (VPU)

        # Assemble fused LHS = [s_t | r_t*e_0] in VMEM scratch (static slices).
        lhs_ref[:, :D_p] = s_t
        lhs_ref[:, D_p:] = re0

        # Single fused matmul on the MXU:
        #   (B, D_p+D_e) @ (D_p+D_e, D_e)  + combined bias (1, D_e)
        z = jnp.dot(lhs_ref[...], w_ref[...],
                    preferred_element_type=jnp.float32) + b_ref[...]

        candidate_t = jnp.tanh(z)                     # EUP
        e_t = re0 + (1.0 - r_t) * candidate_t         # VPU gating blend
        out_ref[...] = e_t.astype(out_ref.dtype)

    return kernel


def prepare_gru_params(w_hi, b_hi, u_hh, b_hh):
    """One-time parameter prep (do NOT call per step).

    Takes torch-layout parameters:
        w_hi: (D_e, D_p), b_hi: (D_e,), u_hh: (D_e, D_e), b_hh: (D_e,)
    Returns:
        w_stacked: (D_p + D_e, D_e)  ==  [W_hi^T ; U_hh^T]
        b:         (1, D_e)          ==  b_hi + b_hh
    """
    w_hi_T = jnp.asarray(w_hi, jnp.float32).T         # (D_p, D_e)
    u_hh_T = jnp.asarray(u_hh, jnp.float32).T         # (D_e, D_e)
    w_stacked = jnp.concatenate([w_hi_T, u_hh_T], axis=0)
    b = (jnp.asarray(b_hi, jnp.float32)
         + jnp.asarray(b_hh, jnp.float32)).reshape(1, -1)
    return w_stacked, b


@jax.jit
def new_gru_cell_forward(s_t, e_0, r_t, w_stacked, b):
    """s_t: (B, D_p), e_0/r_t: (B, D_e), w_stacked: (D_p+D_e, D_e), b: (1, D_e)."""
    B, D_p = s_t.shape
    D_e = e_0.shape[1]
    K = D_p + D_e

    vmem = pl.BlockSpec(memory_space=pltpu.MemorySpace.VMEM)

    return pl.pallas_call(
        _make_gru_cell_kernel(D_p, D_e),
        out_shape=jax.ShapeDtypeStruct((B, D_e), jnp.float32),
        in_specs=[vmem, vmem, vmem, vmem, vmem],
        out_specs=vmem,
        scratch_shapes=[pltpu.VMEM((B, K), jnp.float32)],  # fused-LHS staging buffer
    )(s_t, e_0, r_t, w_stacked, b)


def _reference(s_t, e_0, r_t, w_hi, b_hi, u_hh, b_hh):
    wi = s_t @ w_hi.T + b_hi
    uh = (r_t * e_0) @ u_hh.T + b_hh
    cand = jnp.tanh(wi + uh)
    return r_t * e_0 + (1.0 - r_t) * cand


if __name__ == "__main__":
    # Small shapes consistent with the module: batch=8, D_p=32, D_e=32.
    B, D_p, D_e = 8, 32, 32
    key = jax.random.PRNGKey(0)
    k1, k2, k3, k4, k5, k6, k7 = jax.random.split(key, 7)

    # Deterministic synthetic parameters (torch Linear-style uniform init).
    bound_w = 1.0 / (D_p ** 0.5)
    bound_u = 1.0 / (D_e ** 0.5)
    w_hi = jax.random.uniform(k1, (D_e, D_p), jnp.float32, -bound_w, bound_w)
    b_hi = jax.random.uniform(k2, (D_e,), jnp.float32, -bound_w, bound_w)
    u_hh = jax.random.uniform(k3, (D_e, D_e), jnp.float32, -bound_u, bound_u)
    b_hh = jax.random.uniform(k4, (D_e,), jnp.float32, -bound_u, bound_u)

    # Inputs.
    s_t = jax.random.normal(k5, (B, D_p), jnp.float32)
    e_0 = jax.random.normal(k6, (B, D_e), jnp.float32)
    r_t = jax.nn.sigmoid(jax.random.normal(k7, (B, D_e), jnp.float32))  # gate in [0,1]

    # One-time parameter preparation (stacked weight + combined bias).
    w_stacked, b = prepare_gru_params(w_hi, b_hi, u_hh, b_hh)
    w_stacked = jax.block_until_ready(w_stacked)
    b = jax.block_until_ready(b)

    # Per-step forward: a single pallas_call, no wrapper-side glue ops.
    e_t = new_gru_cell_forward(s_t, e_0, r_t, w_stacked, b)
    e_t = jax.block_until_ready(e_t)

    ref = _reference(s_t, e_0, r_t, w_hi, b_hi, u_hh, b_hh)
    assert e_t.shape == (B, D_e)
    assert jnp.allclose(e_t, ref, atol=1e-5, rtol=1e-5), "mismatch vs reference"

    print("KERNEL_OK")
</pallas_src>

<mosaic_0001>
module attributes {stable_mosaic.version = 11 : i64} {
  func.func @kernel(%arg0: memref<8x32xf32, #tpu.memory_space<vmem>>, %arg1: memref<8x32xf32, #tpu.memory_space<vmem>>, %arg2: memref<8x32xf32, #tpu.memory_space<vmem>>, %arg3: memref<64x32xf32, #tpu.memory_space<vmem>>, %arg4: memref<1x32xf32, #tpu.memory_space<vmem>>, %arg5: memref<8x32xf32, #tpu.memory_space<vmem>>, %arg6: memref<8x64xf32, #tpu.memory_space<vmem>>) attributes {dimension_semantics = [], scalar_prefetch = 0 : i64, scratch_operands = 1 : i64, tpu.core_type = #tpu.core_type<tc>} {
    %c0 = arith.constant 0 : index
    %c0_0 = arith.constant 0 : index
    %0 = vector.load %arg0[%c0, %c0_0] : memref<8x32xf32, #tpu.memory_space<vmem>>, vector<8x32xf32>
    %c0_1 = arith.constant 0 : index
    %c0_2 = arith.constant 0 : index
    %1 = vector.load %arg1[%c0_1, %c0_2] : memref<8x32xf32, #tpu.memory_space<vmem>>, vector<8x32xf32>
    %c0_3 = arith.constant 0 : index
    %c0_4 = arith.constant 0 : index
    %2 = vector.load %arg2[%c0_3, %c0_4] : memref<8x32xf32, #tpu.memory_space<vmem>>, vector<8x32xf32>
    %3 = arith.mulf %2, %1 : vector<8x32xf32>
    %c0_5 = arith.constant 0 : index
    %c0_6 = arith.constant 0 : index
    %4 = vector.load %arg6[%c0_5, %c0_6] : memref<8x64xf32, #tpu.memory_space<vmem>>, vector<8x32xf32>
    tpu.vector_store %arg6[%c0_5, %c0_6], %0 {strides = array<i32>} : memref<8x64xf32, #tpu.memory_space<vmem>>, vector<8x32xf32>,
    %c0_7 = arith.constant 0 : index
    %c32 = arith.constant 32 : index
    %5 = vector.load %arg6[%c0_7, %c32] : memref<8x64xf32, #tpu.memory_space<vmem>>, vector<8x32xf32>
    tpu.vector_store %arg6[%c0_7, %c32], %3 {strides = array<i32>} : memref<8x64xf32, #tpu.memory_space<vmem>>, vector<8x32xf32>,
    %c0_8 = arith.constant 0 : index
    %c0_9 = arith.constant 0 : index
    %6 = vector.load %arg6[%c0_8, %c0_9] : memref<8x64xf32, #tpu.memory_space<vmem>>, vector<8x64xf32>
    %c0_10 = arith.constant 0 : index
    %c0_11 = arith.constant 0 : index
    %7 = vector.load %arg3[%c0_10, %c0_11] : memref<64x32xf32, #tpu.memory_space<vmem>>, vector<64x32xf32>
    %cst = arith.constant dense<0.000000e+00> : vector<8x32xf32>
    %8 = tpu.matmul %6, %7, %cst {dimension_numbers = #tpu.dot_dimension_numbers<[1], [0], [0], [1], [0, 0, 1, 1], [], []>} : vector<8x64xf32>, vector<64x32xf32>, vector<8x32xf32> -> vector<8x32xf32>
    %c0_12 = arith.constant 0 : index
    %c0_13 = arith.constant 0 : index
    %9 = vector.load %arg4[%c0_12, %c0_13] : memref<1x32xf32, #tpu.memory_space<vmem>>, vector<1x32xf32>
    %10 = vector.broadcast %9 : vector<1x32xf32> to vector<8x32xf32>
    %11 = arith.addf %8, %10 : vector<8x32xf32>
    %12 = math.tanh %11 : vector<8x32xf32>
    %cst_14 = arith.constant 1.000000e+00 : f32
    %13 = vector.broadcast %cst_14 : f32 to vector<8x32xf32>
    %14 = arith.subf %13, %2 : vector<8x32xf32>
    %15 = arith.mulf %14, %12 : vector<8x32xf32>
    %16 = arith.addf %3, %15 : vector<8x32xf32>
    %c0_15 = arith.constant 0 : index
    %c0_16 = arith.constant 0 : index
    %17 = vector.load %arg5[%c0_15, %c0_16] : memref<8x32xf32, #tpu.memory_space<vmem>>, vector<8x32xf32>
    tpu.vector_store %arg5[%c0_15, %c0_16], %16 {strides = array<i32>} : memref<8x32xf32, #tpu.memory_space<vmem>>, vector<8x32xf32>,
    return
  }
}

</mosaic_0001>

<llo_original>
// kernel: new_gru_cell_forward.1
$region0: #{new_gru_cell_forward.1}
  #allocation0 [shape = 'u32[]', space=smem, size = 0x4, offset = 0x4, fixed_abs, tag = 'smem constant byte address 0x4 - core index']
  #allocation1 [shape = 'u32[144,128]{1,0:T(1,128)}', space=vmem, size = 0x12000, scoped, tag = 'internal scratch']
  #allocation2 [shape = 'f32[8,64]{1,0:T(8,128)}', space=vmem, size = 0x1000, scoped, tag = 'scratch operand']
  %s0 = inlined_call_operand.vmem [shape: f32[8,32], index: 0, kind: input, shape index: {}]
  %s1 = inlined_call_operand.vmem [shape: f32[8,32], index: 1, kind: input, shape index: {}]
  %s2 = inlined_call_operand.vmem [shape: f32[8,32], index: 2, kind: input, shape index: {}]
  %s3 = inlined_call_operand.vmem [shape: f32[64,32], index: 3, kind: input, shape index: {}]
  %s4 = inlined_call_operand.vmem [shape: f32[1,32], index: 4, kind: input, shape index: {}]
  %s5 = inlined_call_operand.hbm [shape: f32[8,32], index: 5, kind: output, shape index: {}]
  %s6 = sld [smem:[#allocation0]]
  $region30: #{new_gru_cell_forward.1} parent=0
    _
  %s8 = ssub.s32 1, %s6
  %s9 = scalar_select 0, %s8, %s6
  $region1: #{new_gru_cell_forward.1} parent=0
    #allocation3 [shape = 'u8[4096]{0}', space=vmem, size = 0x1000, scoped, tag = 'output window, operand 0, single buffered']
    #allocation4 [shape = 's32[1]{0}', space=sflag, size = 0x4, scoped, tag = 'scoped memory for new_gru_cell_forward.1']
    %10 = vsyncpa [#allocation4], 0
    // Predicated region
    $region2: #{new_gru_cell_forward.1} parent=1 // pred_check
      _
    $region3: #{new_gru_cell_forward.1} parent=1 // pred_check_branch
      %12 = sbr.rel (0) target = $region5
    $region4: #{new_gru_cell_forward.1} parent=1 // pred_region
      _
    $region5: #{new_gru_cell_forward.1} parent=1 // pred_fallthru
      _
    // Predicated region
    $region6: #{new_gru_cell_forward.1} parent=1 // pred_check
      _
    $region7: #{new_gru_cell_forward.1} parent=1 // pred_check_branch
      %14 = sbr.rel (0) target = $region9
    $region8: #{new_gru_cell_forward.1} parent=1 // pred_region
      _
    $region9: #{new_gru_cell_forward.1} parent=1 // pred_fallthru
      _
    // Predicated region
    $region10: #{new_gru_cell_forward.1} parent=1 // pred_check
      _
    $region11: #{new_gru_cell_forward.1} parent=1 // pred_check_branch
      %16 = sbr.rel (0) target = $region13
    $region12: #{new_gru_cell_forward.1} parent=1 // pred_region
      _
    $region13: #{new_gru_cell_forward.1} parent=1 // pred_fallthru
      _
    // Predicated region
    $region14: #{new_gru_cell_forward.1} parent=1 // pred_check
      _
    $region15: #{new_gru_cell_forward.1} parent=1 // pred_check_branch
      %18 = sbr.rel (0) target = $region17
    $region16: #{new_gru_cell_forward.1} parent=1 // pred_region
      _
    $region17: #{new_gru_cell_forward.1} parent=1 // pred_fallthru
      _
    // Predicated region
    $region18: #{new_gru_cell_forward.1} parent=1 // pred_check
      _
    $region19: #{new_gru_cell_forward.1} parent=1 // pred_check_branch
      %20 = sbr.rel (0) target = $region21
    $region20: #{new_gru_cell_forward.1} parent=1 // pred_region
      _
    $region21: #{new_gru_cell_forward.1} parent=1 // pred_fallthru
      _
    %v21 = vld [vmem:[%s0] sm:$0xff]
    %v22 = vld [vmem:[%s1] sm:$0xff]
    %v23 = vld [vmem:[%s2] sm:$0xff]
    %v24 = vmul.f32 %v23, %v22
    %vm25 = vcmask 261120
    %26 = vst.msk [vmem:[#allocation2] sm:$0xff] %vm25, %v21
    %28 = vrot.lane.b32.xlu0 %v24, 32
    %v29 = vpop.permute.xlu0 %28
    %vm31 = vcmask 523520
    %32 = vst.msk [vmem:[#allocation2] sm:$0xff] %vm31, %v29
    %v33 = vld [vmem:[#allocation2] sm:$0xff]
    %v34 = vld [vmem:[%s3] sm:$0xff]
    %v35 = vld [vmem:[%s3 + $0x8] sm:$0xff]
    %v36 = vld [vmem:[%s3 + $0x10] sm:$0xff]
    %v37 = vld [vmem:[%s3 + $0x18] sm:$0xff]
    %v38 = vld [vmem:[%s3 + $0x20] sm:$0xff]
    %v39 = vld [vmem:[%s3 + $0x28] sm:$0xff]
    %v40 = vld [vmem:[%s3 + $0x30] sm:$0xff]
    %v41 = vld [vmem:[%s3 + $0x38] sm:$0xff]
    %v42 = vld [vmem:[%s4] sm:$0x1]
    %v44 = vlaneseq
    %v45 = vshrl.u32 %v44, 7
    %v46 = vsub.s32 0, %v45
    %v47 = vrot.slane %v42, %v46
    %vm49 = vcmask 523264
    %v51 = vsel %vm49, %v33, 0
    %53 = vmatprep.subr.mxu0 0.0
    %54 = vmatpush1.msra.mxu0 0.0
    %55 = vmatprep.subr.mxu0 0.0
    %56 = vmatpush1.msra.mxu0 0.0
    %57 = vmatprep.subr.mxu0 0.0
    %58 = vmatpush1.msra.mxu0 0.0
    %59 = vmatprep.subr.mxu0 0.0
    %60 = vmatpush1.msra.mxu0 0.0
    %61 = vmatprep.subr.mxu0 0.0
    %62 = vmatpush1.msra.mxu0 0.0
    %63 = vmatprep.subr.mxu0 0.0
    %64 = vmatpush1.msra.mxu0 0.0
    %65 = vmatprep.subr.mxu0 0.0
    %66 = vmatpush1.msra.mxu0 0.0
    %67 = vmatprep.subr.mxu0 0.0
    %68 = vmatpush1.msra.mxu0 0.0
    %69 = vmatprep.subr.mxu0 0.0
    %70 = vmatpush1.msra.mxu0 %v41
    %71 = vmatprep.subr.mxu0 0.0
    %72 = vmatpush1.msra.mxu0 %v40
    %73 = vmatprep.subr.mxu0 0.0
    %74 = vmatpush1.msra.mxu0 %v39
    %75 = vmatprep.subr.mxu0 0.0
    %76 = vmatpush1.msra.mxu0 %v38
    %77 = vmatprep.subr.mxu0 0.0
    %78 = vmatpush1.msra.mxu0 %v37
    %79 = vmatprep.subr.mxu0 0.0
    %80 = vmatpush1.msra.mxu0 %v36
    %81 = vmatprep.subr.mxu0 0.0
    %82 = vmatpush1.msra.mxu0 %v35
    %83 = vmatprep.subr.mxu0 0.0
    %84 = vmatpush1.msra.mxu0 %v34
    %85 = vmatprep.subr.mxu0 0.0
    %86 = vmatpush2.msra.mxu0 0.0
    %87 = vmatprep.subr.mxu0 0.0
    %88 = vmatpush2.msra.mxu0 0.0
    %89 = vmatprep.subr.mxu0 0.0
    %90 = vmatpush2.msra.mxu0 0.0
    %91 = vmatprep.subr.mxu0 0.0
    %92 = vmatpush2.msra.mxu0 0.0
    %93 = vmatprep.subr.mxu0 0.0
    %94 = vmatpush2.msra.mxu0 0.0
    %95 = vmatprep.subr.mxu0 0.0
    %96 = vmatpush2.msra.mxu0 0.0
    %97 = vmatprep.subr.mxu0 0.0
    %98 = vmatpush2.msra.mxu0 0.0
    %99 = vmatprep.subr.mxu0 0.0
    %100 = vmatpush2.msra.mxu0 0.0
    %101 = vmatprep.subr.mxu0 0.0
    %102 = vmatpush2.msra.mxu0 0.0
    %103 = vmatprep.subr.mxu0 0.0
    %104 = vmatpush2.msra.mxu0 0.0
    %105 = vmatprep.subr.mxu0 0.0
    %106 = vmatpush2.msra.mxu0 0.0
    %107 = vmatprep.subr.mxu0 0.0
    %108 = vmatpush2.msra.mxu0 0.0
    %109 = vmatprep.subr.mxu0 0.0
    %110 = vmatpush2.msra.mxu0 0.0
    %111 = vmatprep.subr.mxu0 0.0
    %112 = vmatpush2.msra.mxu0 0.0
    %113 = vmatprep.subr.mxu0 0.0
    %114 = vmatpush2.msra.mxu0 0.0
    %115 = vmatprep.subr.mxu0 0.0
    %116 = vmatpush2.msra.mxu0 0.0
    %117 = vmatprep.mubr.f32.mxu0 0.0
    %118 = vmatmul.mubr.f32.gmra.mxu0 %v51
    %v119 = vpop.f32.mrf.mxu0
    %v120 = vadd.f32 %v47, %v119
    %v121 = vpop.f32.mrf.mxu0
    %122 = vdwg.mxu0
    %v123 = vtanh.pop %v120
    %v124 = vsub.f32 1.0, %v23
    %v125 = vmul.f32 %v124, %v123
    %v126 = vadd.f32 %v24, %v125
    %127 = vst.msk [vmem:[#allocation3] sm:$0xff] %vm25, %v126
    // Predicated region
    $region22: #{new_gru_cell_forward.1} parent=1 // pred_check
      _
    $region23: #{new_gru_cell_forward.1} parent=1 // pred_check_branch
      %129 = sbr.rel (0) target = $region25
    $region24: #{new_gru_cell_forward.1} parent=1 // pred_region
      %s131 = ssub.s32 128, 128
      %132 = vsyncadd [#allocation4], %s131
      %s134 = sshll.u32 [#allocation3], 4
      %s135 = int_to_ptr.vmem [resolvable:$true] %s134
      %137 = dma.vmem_to_hbm [thread:$0]  %s135, 128, %s5, [#allocation4]
    $region25: #{new_gru_cell_forward.1} parent=1 // pred_fallthru
      _
    // Predicated region
    $region26: #{new_gru_cell_forward.1} parent=1 // pred_check
      _
    $region27: #{new_gru_cell_forward.1} parent=1 // pred_check_branch
      %139 = sbr.rel (0) target = $region29
    $region28: #{new_gru_cell_forward.1} parent=1 // pred_region
      %140 = dma.done [#allocation4], 128
    $region29: #{new_gru_cell_forward.1} parent=1 // pred_fallthru
      _
    %141 = vsyncpa [#allocation4], 1

</llo_original>
